<compile_context>
chip_gen: v5e
topology: v5e:2x2
jax: 0.10.0
libtpu: 0.0.40
codegen_flags: <defaults>
</compile_context>

<pallas_src>
import jax
import jax.numpy as jnp
from jax import lax
from jax.experimental import pallas as pl
from jax.experimental.pallas import tpu as pltpu


def _resblock_kernel(x_ref, w1_ref, b1_ref, w2_ref, b2_ref, out_ref):
    # x_ref : (Nb, H, WC)     f32  — unpadded lane-dense activations
    # w*_ref: (3*WC, WC)      bf16 — block-banded weights, BN scale folded in
    # b*_ref: (1, WC)         f32  — folded BN shift (per-channel, tiled over W)
    # out   : (Nb, H, WC)     f32
    Nb, H, WC = out_ref.shape

    x_f32 = x_ref[...]                                   # keep f32 for residual
    x_bf = x_f32.astype(jnp.bfloat16)                    # MXU LHS precision

    zrows = jnp.zeros((Nb, 1, WC), jnp.bfloat16)

    def taps(padded):
        # padded: (Nb, H+2, WC) -> (Nb*H, 3*WC) lane-concat of the 3 ky slabs.
        slabs = [padded[:, ky:ky + H, :].reshape(Nb * H, WC) for ky in range(3)]
        return jnp.concatenate(slabs, axis=-1)

    # ---- conv1 (+BN1 scale folded into weights): one K=3*WC MXU matmul ----
    xp = jnp.concatenate([zrows, x_bf, zrows], axis=1)   # (Nb, H+2, WC)
    a1 = jnp.dot(taps(xp), w1_ref[...], preferred_element_type=jnp.float32)
    y1 = jnp.maximum(a1 + b1_ref[...], 0.0)              # BN1 shift + ReLU

    # ---- conv2 (+BN2 scale folded): pad intermediate in-register ----------
    y1p = jnp.concatenate(
        [zrows, y1.astype(jnp.bfloat16).reshape(Nb, H, WC), zrows], axis=1)
    a2 = jnp.dot(taps(y1p), w2_ref[...], preferred_element_type=jnp.float32)
    y2 = a2 + b2_ref[...]                                # BN2 shift

    # identity residual in f32 (downsize=None, in_planes == out_planes) + ReLU
    res = x_f32.reshape(Nb * H, WC)
    out = jnp.maximum(y2 + res, 0.0)
    out_ref[...] = out.reshape(Nb, H, WC).astype(out_ref.dtype)


def _pick_batch_block(N, H):
    """Largest Nb dividing N with Nb*H <~ 128 rows, keeping >= 2 grid steps."""
    if N < 2:
        return 1
    target = max(1, -(-128 // H))                        # cdiv(128, H)
    nb = 1
    for cand in range(1, N // 2 + 1):
        if N % cand == 0 and cand <= target:
            nb = cand
    return nb


def resblock_forward(x_nchw, w1, bn1, w2, bn2, eps=1e-5):
    """x_nchw: (N, C, H, W) f32. w*: (Cout, Cin, 3, 3) torch layout.
    bn*: tuple (gamma, beta, running_mean, running_var), each (C,)."""
    N, C, H, W = x_nchw.shape
    WC = W * C

    # NCHW -> NHWC -> lane-dense (N, H, W*C). Kept f32 so the residual path is
    # exact; the kernel casts to bf16 only for the MXU operands.
    x = jnp.transpose(x_nchw, (0, 2, 3, 1)).reshape(N, H, WC).astype(jnp.float32)

    def fold_bn(bn):
        gamma, beta, mean, var = bn
        scale = gamma / jnp.sqrt(var + eps)              # (C,)
        shift = beta - mean * scale                      # (C,)
        return scale, shift

    def band(w, scale):
        # torch (Cout, Cin, 3, 3) -> (3*W*Cin, W*Cout) block-banded matrix with
        # the BN scale folded into the output columns (f32, then bf16 cast).
        # M[ky*WC + w_in*Cin + ci, w_out*Cout + co] = w[co, ci, ky, kx]*scale[co]
        #   with w_in = w_out + kx - 1 (zero outside [0, W) == W zero-padding).
        mats = []
        for ky in range(3):
            m = jnp.zeros((WC, WC), jnp.float32)
            for kx in range(3):
                sel = jnp.eye(W, k=1 - kx, dtype=jnp.float32)             # (W, W)
                blk = jnp.transpose(w[:, :, ky, kx]).astype(jnp.float32)  # (Cin, Cout)
                m = m + jnp.kron(sel, blk)
            mats.append(m)
        m = jnp.concatenate(mats, axis=0)                # (3*WC, WC)
        m = m * jnp.tile(scale, W)[None, :]              # fold BN scale (f32)
        return m.astype(jnp.bfloat16)

    s1, sh1 = fold_bn(bn1)
    s2, sh2 = fold_bn(bn2)
    w1t = band(w1, s1)
    w2t = band(w2, s2)
    b1t = jnp.tile(sh1, W).reshape(1, WC).astype(jnp.float32)
    b2t = jnp.tile(sh2, W).reshape(1, WC).astype(jnp.float32)

    Nb = _pick_batch_block(N, H)                         # batch images per step
    grid = (N // Nb,)

    out = pl.pallas_call(
        _resblock_kernel,
        out_shape=jax.ShapeDtypeStruct((N, H, WC), jnp.float32),
        grid_spec=pltpu.PrefetchScalarGridSpec(
            num_scalar_prefetch=0,
            grid=grid,
            in_specs=[
                pl.BlockSpec((Nb, H, WC), lambda n: (n, 0, 0)),
                pl.BlockSpec((3 * WC, WC), lambda n: (0, 0)),
                pl.BlockSpec((1, WC), lambda n: (0, 0)),
                pl.BlockSpec((3 * WC, WC), lambda n: (0, 0)),
                pl.BlockSpec((1, WC), lambda n: (0, 0)),
            ],
            out_specs=pl.BlockSpec((Nb, H, WC), lambda n: (n, 0, 0)),
        ),
        compiler_params=pltpu.CompilerParams(
            dimension_semantics=("parallel",)),
    )(x, w1t, b1t, w2t, b2t)

    out = out.reshape(N, H, W, C)
    return jnp.transpose(out, (0, 3, 1, 2))              # back to NCHW


def resblock_reference(x_nchw, w1, bn1, w2, bn2, eps=1e-5):
    """Pure-JAX f32 reference (lax.conv) matching the PyTorch forward (eval-mode BN)."""
    x = jnp.transpose(x_nchw, (0, 2, 3, 1))

    def conv(inp, w):
        w_hwio = jnp.transpose(w, (2, 3, 1, 0))
        return lax.conv_general_dilated(
            inp, w_hwio, window_strides=(1, 1), padding='SAME',
            dimension_numbers=('NHWC', 'HWIO', 'NHWC'))

    def bn(inp, params):
        gamma, beta, mean, var = params
        return (inp - mean) / jnp.sqrt(var + eps) * gamma + beta

    out = jax.nn.relu(bn(conv(x, w1), bn1))
    out = bn(conv(out, w2), bn2)
    out = jax.nn.relu(out + x)
    return jnp.transpose(out, (0, 3, 1, 2))


if __name__ == "__main__":
    # in_planes == out_planes == 8, stride=1, downsize=None; W*C = 128 lanes.
    N, C, H, W = 2, 8, 16, 16

    key = jax.random.PRNGKey(0)
    ks = jax.random.split(key, 12)

    x = jax.random.normal(ks[0], (N, C, H, W), dtype=jnp.float32)

    w1 = 0.2 * jax.random.normal(ks[1], (C, C, 3, 3), dtype=jnp.float32)
    w2 = 0.2 * jax.random.normal(ks[2], (C, C, 3, 3), dtype=jnp.float32)

    bn1 = (jax.random.uniform(ks[3], (C,), minval=0.5, maxval=1.5),   # gamma
           0.1 * jax.random.normal(ks[4], (C,)),                      # beta
           0.1 * jax.random.normal(ks[5], (C,)),                      # running_mean
           jax.random.uniform(ks[6], (C,), minval=0.5, maxval=1.5))   # running_var
    bn2 = (jax.random.uniform(ks[7], (C,), minval=0.5, maxval=1.5),
           0.1 * jax.random.normal(ks[8], (C,)),
           0.1 * jax.random.normal(ks[9], (C,)),
           jax.random.uniform(ks[10], (C,), minval=0.5, maxval=1.5))

    out = jax.block_until_ready(resblock_forward(x, w1, bn1, w2, bn2))
    ref = jax.block_until_ready(resblock_reference(x, w1, bn1, w2, bn2))

    assert out.shape == (N, C, H, W), out.shape
    # Residual path is now exact f32; remaining drift comes only from the bf16
    # conv weights/activations (f32 MXU accumulation) vs the full-f32 reference.
    max_diff = jnp.max(jnp.abs(out - ref))
    assert jnp.allclose(out, ref, atol=1e-1, rtol=5e-2), \
        f"max abs diff: {max_diff}"
    print("KERNEL_OK")
</pallas_src>

<mosaic_0001>
module attributes {stable_mosaic.version = 11 : i64} {
  func.func @_resblock_kernel(%arg0: i32, %arg1: memref<1x16x128xf32, #tpu.memory_space<vmem>>, %arg2: memref<384x128xbf16, #tpu.memory_space<vmem>>, %arg3: memref<1x128xf32, #tpu.memory_space<vmem>>, %arg4: memref<384x128xbf16, #tpu.memory_space<vmem>>, %arg5: memref<1x128xf32, #tpu.memory_space<vmem>>, %arg6: memref<1x16x128xf32, #tpu.memory_space<vmem>>) attributes {dimension_semantics = [#tpu.dimension_semantics<parallel>], iteration_bounds = array<i64: 2>, scalar_prefetch = 0 : i64, scratch_operands = 0 : i64, tpu.core_type = #tpu.core_type<tc>, window_params = [{transform_indices = @transform_0, window_bounds = array<i64: 1, 16, 128>}, {pipeline_mode = #tpu.pipeline_mode<synchronous>, transform_indices = @transform_1, window_bounds = array<i64: 384, 128>}, {pipeline_mode = #tpu.pipeline_mode<synchronous>, transform_indices = @transform_2, window_bounds = array<i64: 1, 128>}, {pipeline_mode = #tpu.pipeline_mode<synchronous>, transform_indices = @transform_3, window_bounds = array<i64: 384, 128>}, {pipeline_mode = #tpu.pipeline_mode<synchronous>, transform_indices = @transform_4, window_bounds = array<i64: 1, 128>}, {transform_indices = @transform_5, window_bounds = array<i64: 1, 16, 128>}]} {
    %c0 = arith.constant 0 : index
    %c0_0 = arith.constant 0 : index
    %c0_1 = arith.constant 0 : index
    %0 = vector.load %arg1[%c0, %c0_0, %c0_1] : memref<1x16x128xf32, #tpu.memory_space<vmem>>, vector<1x16x128xf32>
    %1 = arith.truncf %0 : vector<1x16x128xf32> to vector<1x16x128xbf16>
    %cst = arith.constant 0.000000e+00 : bf16
    %2 = vector.broadcast %cst : bf16 to vector<1x1x128xbf16>
    %3 = tpu.concatenate %2, %1, %2 in 1 : vector<1x1x128xbf16>, vector<1x16x128xbf16>, vector<1x1x128xbf16> -> vector<1x18x128xbf16>
    %4 = vector.extract_strided_slice %3 {offsets = [0, 0, 0], sizes = [1, 16, 128], strides = [1, 1, 1]} : vector<1x18x128xbf16> to vector<1x16x128xbf16>
    %5 = vector.shape_cast %4 : vector<1x16x128xbf16> to vector<16x128xbf16>
    %6 = vector.extract_strided_slice %3 {offsets = [0, 1, 0], sizes = [1, 16, 128], strides = [1, 1, 1]} : vector<1x18x128xbf16> to vector<1x16x128xbf16>
    %7 = vector.shape_cast %6 : vector<1x16x128xbf16> to vector<16x128xbf16>
    %8 = vector.extract_strided_slice %3 {offsets = [0, 2, 0], sizes = [1, 16, 128], strides = [1, 1, 1]} : vector<1x18x128xbf16> to vector<1x16x128xbf16>
    %9 = vector.shape_cast %8 : vector<1x16x128xbf16> to vector<16x128xbf16>
    %10 = tpu.concatenate %5, %7, %9 in 1 : vector<16x128xbf16>, vector<16x128xbf16>, vector<16x128xbf16> -> vector<16x384xbf16>
    %c0_2 = arith.constant 0 : index
    %c0_3 = arith.constant 0 : index
    %11 = vector.load %arg2[%c0_2, %c0_3] : memref<384x128xbf16, #tpu.memory_space<vmem>>, vector<384x128xbf16>
    %cst_4 = arith.constant dense<0.000000e+00> : vector<16x128xf32>
    %12 = tpu.matmul %10, %11, %cst_4 {dimension_numbers = #tpu.dot_dimension_numbers<[1], [0], [0], [1], [0, 0, 1, 1], [], []>} : vector<16x384xbf16>, vector<384x128xbf16>, vector<16x128xf32> -> vector<16x128xf32>
    %c0_5 = arith.constant 0 : index
    %c0_6 = arith.constant 0 : index
    %13 = vector.load %arg3[%c0_5, %c0_6] : memref<1x128xf32, #tpu.memory_space<vmem>>, vector<1x128xf32>
    %14 = vector.broadcast %13 : vector<1x128xf32> to vector<16x128xf32>
    %15 = arith.addf %12, %14 : vector<16x128xf32>
    %cst_7 = arith.constant 0.000000e+00 : f32
    %16 = vector.broadcast %cst_7 : f32 to vector<16x128xf32>
    %17 = arith.maximumf %15, %16 : vector<16x128xf32>
    %18 = arith.truncf %17 : vector<16x128xf32> to vector<16x128xbf16>
    %19 = vector.shape_cast %18 : vector<16x128xbf16> to vector<1x16x128xbf16>
    %20 = tpu.concatenate %2, %19, %2 in 1 : vector<1x1x128xbf16>, vector<1x16x128xbf16>, vector<1x1x128xbf16> -> vector<1x18x128xbf16>
    %21 = vector.extract_strided_slice %20 {offsets = [0, 0, 0], sizes = [1, 16, 128], strides = [1, 1, 1]} : vector<1x18x128xbf16> to vector<1x16x128xbf16>
    %22 = vector.shape_cast %21 : vector<1x16x128xbf16> to vector<16x128xbf16>
    %23 = vector.extract_strided_slice %20 {offsets = [0, 1, 0], sizes = [1, 16, 128], strides = [1, 1, 1]} : vector<1x18x128xbf16> to vector<1x16x128xbf16>
    %24 = vector.shape_cast %23 : vector<1x16x128xbf16> to vector<16x128xbf16>
    %25 = vector.extract_strided_slice %20 {offsets = [0, 2, 0], sizes = [1, 16, 128], strides = [1, 1, 1]} : vector<1x18x128xbf16> to vector<1x16x128xbf16>
    %26 = vector.shape_cast %25 : vector<1x16x128xbf16> to vector<16x128xbf16>
    %27 = tpu.concatenate %22, %24, %26 in 1 : vector<16x128xbf16>, vector<16x128xbf16>, vector<16x128xbf16> -> vector<16x384xbf16>
    %c0_8 = arith.constant 0 : index
    %c0_9 = arith.constant 0 : index
    %28 = vector.load %arg4[%c0_8, %c0_9] : memref<384x128xbf16, #tpu.memory_space<vmem>>, vector<384x128xbf16>
    %cst_10 = arith.constant dense<0.000000e+00> : vector<16x128xf32>
    %29 = tpu.matmul %27, %28, %cst_10 {dimension_numbers = #tpu.dot_dimension_numbers<[1], [0], [0], [1], [0, 0, 1, 1], [], []>} : vector<16x384xbf16>, vector<384x128xbf16>, vector<16x128xf32> -> vector<16x128xf32>
    %c0_11 = arith.constant 0 : index
    %c0_12 = arith.constant 0 : index
    %30 = vector.load %arg5[%c0_11, %c0_12] : memref<1x128xf32, #tpu.memory_space<vmem>>, vector<1x128xf32>
    %31 = vector.broadcast %30 : vector<1x128xf32> to vector<16x128xf32>
    %32 = arith.addf %29, %31 : vector<16x128xf32>
    %33 = vector.shape_cast %0 : vector<1x16x128xf32> to vector<16x128xf32>
    %34 = arith.addf %32, %33 : vector<16x128xf32>
    %cst_13 = arith.constant 0.000000e+00 : f32
    %35 = vector.broadcast %cst_13 : f32 to vector<16x128xf32>
    %36 = arith.maximumf %34, %35 : vector<16x128xf32>
    %37 = vector.shape_cast %36 : vector<16x128xf32> to vector<1x16x128xf32>
    %c0_14 = arith.constant 0 : index
    %c0_15 = arith.constant 0 : index
    %c0_16 = arith.constant 0 : index
    %38 = vector.load %arg6[%c0_14, %c0_15, %c0_16] : memref<1x16x128xf32, #tpu.memory_space<vmem>>, vector<1x16x128xf32>
    tpu.vector_store %arg6[%c0_14, %c0_15, %c0_16], %37 {strides = array<i32>} : memref<1x16x128xf32, #tpu.memory_space<vmem>>, vector<1x16x128xf32>,
    return
  }
  func.func @transform_0(%arg0: i32) -> (i32, i32, i32) {
    %c0_i32 = arith.constant 0 : i32
    %c0_i32_0 = arith.constant 0 : i32
    %c0_i32_1 = arith.constant 0 : i32
    return %arg0, %c0_i32, %c0_i32_0 : i32, i32, i32
  }
  func.func @transform_1(%arg0: i32) -> (i32, i32) {
    %c0_i32 = arith.constant 0 : i32
    %c0_i32_0 = arith.constant 0 : i32
    %c0_i32_1 = arith.constant 0 : i32
    return %c0_i32, %c0_i32_0 : i32, i32
  }
  func.func @transform_2(%arg0: i32) -> (i32, i32) {
    %c0_i32 = arith.constant 0 : i32
    %c0_i32_0 = arith.constant 0 : i32
    %c0_i32_1 = arith.constant 0 : i32
    return %c0_i32, %c0_i32_0 : i32, i32
  }
  func.func @transform_3(%arg0: i32) -> (i32, i32) {
    %c0_i32 = arith.constant 0 : i32
    %c0_i32_0 = arith.constant 0 : i32
    %c0_i32_1 = arith.constant 0 : i32
    return %c0_i32, %c0_i32_0 : i32, i32
  }
  func.func @transform_4(%arg0: i32) -> (i32, i32) {
    %c0_i32 = arith.constant 0 : i32
    %c0_i32_0 = arith.constant 0 : i32
    %c0_i32_1 = arith.constant 0 : i32
    return %c0_i32, %c0_i32_0 : i32, i32
  }
  func.func @transform_5(%arg0: i32) -> (i32, i32, i32) {
    %c0_i32 = arith.constant 0 : i32
    %c0_i32_0 = arith.constant 0 : i32
    %c0_i32_1 = arith.constant 0 : i32
    return %arg0, %c0_i32, %c0_i32_0 : i32, i32, i32
  }
}

</mosaic_0001>

<llo_original>
// kernel: tpu_custom_call.1
$region0: #{tpu_custom_call.1}
  #allocation0 [shape = 'u32[]', space=smem, size = 0x4, offset = 0x4, fixed_abs, tag = 'smem constant byte address 0x4 - core index']
  #allocation1 [shape = 'u32[72,128]{1,0:T(1,128)}', space=vmem, size = 0x9000, scoped, tag = 'internal scratch']
  %s0 = inlined_call_operand.hbm [shape: f32[2,16,128], index: 0, kind: input, shape index: {}]
  %s1 = inlined_call_operand.hbm [shape: bf16[384,128], index: 1, kind: input, shape index: {}]
  %s2 = inlined_call_operand.vmem [shape: f32[1,128], index: 2, kind: input, shape index: {}]
  %s3 = inlined_call_operand.hbm [shape: bf16[384,128], index: 3, kind: input, shape index: {}]
  %s4 = inlined_call_operand.vmem [shape: f32[1,128], index: 4, kind: input, shape index: {}]
  %s5 = inlined_call_operand.hbm [shape: f32[2,16,128], index: 5, kind: output, shape index: {}]
  %s6 = sld [smem:[#allocation0]]
  $region65: #{tpu_custom_call.1} parent=0
    _
  %s8 = ssub.s32 1, %s6
  %s9 = scalar_select 0, %s8, %s6
  $region1: #{tpu_custom_call.1} parent=0
    #allocation2 [shape = 'u8[16384]{0}', space=vmem, size = 0x4000, scoped, tag = 'input window, operand 0']
    #allocation3 [shape = 's32[2]{0}', space=sflag, size = 0x8, scoped, tag = 'scoped memory for tpu_custom_call.1']
    #allocation4 [shape = 's32[2]{0}', space=sflag, size = 0x8, scoped, tag = 'scoped memory for tpu_custom_call.1']
    #allocation5 [shape = 'u8[98304]{0}', space=vmem, size = 0x18000, scoped, tag = 'input window, operand 1, single buffered']
    #allocation6 [shape = 's32[1]{0}', space=sflag, size = 0x4, scoped, tag = 'scoped memory for tpu_custom_call.1']
    #allocation7 [shape = 'u8[98304]{0}', space=vmem, size = 0x18000, scoped, tag = 'input window, operand 3, single buffered']
    #allocation8 [shape = 'u8[16384]{0}', space=vmem, size = 0x4000, scoped, tag = 'output window, operand 0']
    %10 = vsyncpa [#allocation3], 0
    %s11 = scalar_lea.sflag [#allocation3], 1
    %12 = vsyncpa %s11, 0
    %13 = vsyncpa [#allocation6], 0
    %14 = vsyncpa [#allocation4], 0
    %s15 = scalar_lea.sflag [#allocation4], 1
    %16 = vsyncpa %s15, 0
    loop: start=0, step=1, limit=4
    $region2: #{tpu_custom_call.1} parent=1 // loop_pre_header
      _
    $region3: #{tpu_custom_call.1} parent=1 // loop_header
      %s18 = sphi 0, %s22
      %p19 = scmp.ge.s32.totalorder %s18, 4
      %s28 = sphi 0, %s30
      %s31 = sphi 0, %s28
      %s32 = sphi 0, %s31
      %s48 = sphi 0, %s32
      %s52 = sphi 0, %s52
      %s54 = sphi 0, %s52
      %s55 = sphi 0, %s54
      %s69 = sphi 0, %s55
      %s73 = sphi 0, %s73
      %s75 = sphi 0, %s73
      %s76 = sphi 0, %s75
      %s90 = sphi 0, %s76
      %s94 = sphi 0, %s94
      %s96 = sphi 0, %s94
      %s97 = sphi 0, %s96
      %s111 = sphi 0, %s97
      %s115 = sphi 0, %s115
      %s117 = sphi 0, %s115
      %s118 = sphi 0, %s117
      %s132 = sphi 0, %s118
      %s138 = sphi 0, %s140
      %s141 = sphi 0, %s138
      %s142 = sphi 0, %s141
      %s158 = sphi 0, %s142
    $region4: #{tpu_custom_call.1} parent=1 // loop_header_branch
      %21 = sbr.rel (%p19) target = $region8
    $region5: #{tpu_custom_call.1} parent=1 // loop_body
      %s23 = ssub.s32 %s18, 1
      %s24 = ssub.s32 %s18, 2
      %s25 = sadd.s32 %s18, 1
      %s26 = ssub.s32 %s18, %s25
      %p27 = scmp.eq.s32.totalorder %s26, 0
      %s29 = sadd.s32 %s28, 1
      %s30 = scalar_select %p27, %s28, %s29
      %p33 = pneg %p27
      %p34 = scmp.eq.s32.totalorder %s18, 1
      %p35 = por %p33, %p34
      %p36 = scmp.ne.s32.totalorder %s28, %s31
      %p37 = scmp.eq.s32.totalorder %s18, 0
      %p38 = por %p36, %p37
      %p39 = scmp.ne.s32.totalorder %s28, %s31
      %p40 = scmp.eq.s32.totalorder %s23, 1
      %p41 = por %p39, %p40
      %p42 = scmp.ne.s32.totalorder %s31, %s32
      %p43 = scmp.eq.s32.totalorder %s23, 0
      %p44 = por %p42, %p43
      %p45 = scmp.ne.s32.totalorder %s31, %s32
      %p46 = scmp.eq.s32.totalorder %s24, 1
      %p47 = por %p45, %p46
      %p49 = scmp.ne.s32.totalorder %s32, %s48
      %p50 = scmp.eq.s32.totalorder %s24, 0
      %p51 = por %p49, %p50
      %s53 = sadd.s32 %s52, 1
      %p56 = scmp.eq.s32.totalorder %s18, 1
      %p57 = scmp.ne.s32.totalorder %s52, %s54
      %p58 = scmp.eq.s32.totalorder %s18, 0
      %p59 = por %p57, %p58
      %p60 = scmp.ne.s32.totalorder %s52, %s54
      %p61 = scmp.eq.s32.totalorder %s23, 1
      %p62 = por %p60, %p61
      %p63 = scmp.ne.s32.totalorder %s54, %s55
      %p64 = scmp.eq.s32.totalorder %s23, 0
      %p65 = por %p63, %p64
      %p66 = scmp.ne.s32.totalorder %s54, %s55
      %p67 = scmp.eq.s32.totalorder %s24, 1
      %p68 = por %p66, %p67
      %p70 = scmp.ne.s32.totalorder %s55, %s69
      %p71 = scmp.eq.s32.totalorder %s24, 0
      %p72 = por %p70, %p71
      %s74 = sadd.s32 %s73, 1
      %p77 = scmp.eq.s32.totalorder %s18, 1
      %p78 = scmp.ne.s32.totalorder %s73, %s75
      %p79 = scmp.eq.s32.totalorder %s18, 0
      %p80 = por %p78, %p79
      %p81 = scmp.ne.s32.totalorder %s73, %s75
      %p82 = scmp.eq.s32.totalorder %s23, 1
      %p83 = por %p81, %p82
      %p84 = scmp.ne.s32.totalorder %s75, %s76
      %p85 = scmp.eq.s32.totalorder %s23, 0
      %p86 = por %p84, %p85
      %p87 = scmp.ne.s32.totalorder %s75, %s76
      %p88 = scmp.eq.s32.totalorder %s24, 1
      %p89 = por %p87, %p88
      %p91 = scmp.ne.s32.totalorder %s76, %s90
      %p92 = scmp.eq.s32.totalorder %s24, 0
      %p93 = por %p91, %p92
      %s95 = sadd.s32 %s94, 1
      %p98 = scmp.eq.s32.totalorder %s18, 1
      %p99 = scmp.ne.s32.totalorder %s94, %s96
      %p100 = scmp.eq.s32.totalorder %s18, 0
      %p101 = por %p99, %p100
      %p102 = scmp.ne.s32.totalorder %s94, %s96
      %p103 = scmp.eq.s32.totalorder %s23, 1
      %p104 = por %p102, %p103
      %p105 = scmp.ne.s32.totalorder %s96, %s97
      %p106 = scmp.eq.s32.totalorder %s23, 0
      %p107 = por %p105, %p106
      %p108 = scmp.ne.s32.totalorder %s96, %s97
      %p109 = scmp.eq.s32.totalorder %s24, 1
      %p110 = por %p108, %p109
      %p112 = scmp.ne.s32.totalorder %s97, %s111
      %p113 = scmp.eq.s32.totalorder %s24, 0
      %p114 = por %p112, %p113
      %s116 = sadd.s32 %s115, 1
      %p119 = scmp.eq.s32.totalorder %s18, 1
      %p120 = scmp.ne.s32.totalorder %s115, %s117
      %p121 = scmp.eq.s32.totalorder %s18, 0
      %p122 = por %p120, %p121
      %p123 = scmp.ne.s32.totalorder %s115, %s117
      %p124 = scmp.eq.s32.totalorder %s23, 1
      %p125 = por %p123, %p124
      %p126 = scmp.ne.s32.totalorder %s117, %s118
      %p127 = scmp.eq.s32.totalorder %s23, 0
      %p128 = por %p126, %p127
      %p129 = scmp.ne.s32.totalorder %s117, %s118
      %p130 = scmp.eq.s32.totalorder %s24, 1
      %p131 = por %p129, %p130
      %p133 = scmp.ne.s32.totalorder %s118, %s132
      %p134 = scmp.eq.s32.totalorder %s24, 0
      %p135 = por %p133, %p134
      %s136 = ssub.s32 %s18, %s25
      %p137 = scmp.eq.s32.totalorder %s136, 0
      %s139 = sadd.s32 %s138, 1
      %s140 = scalar_select %p137, %s138, %s139
      %p143 = pneg %p137
      %p144 = scmp.eq.s32.totalorder %s18, 1
      %p145 = por %p143, %p144
      %p146 = scmp.ne.s32.totalorder %s138, %s141
      %p147 = scmp.eq.s32.totalorder %s18, 0
      %p148 = por %p146, %p147
      %p149 = scmp.ne.s32.totalorder %s138, %s141
      %p150 = scmp.eq.s32.totalorder %s23, 1
      %p151 = por %p149, %p150
      %p152 = scmp.ne.s32.totalorder %s141, %s142
      %p153 = scmp.eq.s32.totalorder %s23, 0
      %p154 = por %p152, %p153
      %p155 = scmp.ne.s32.totalorder %s141, %s142
      %p156 = scmp.eq.s32.totalorder %s24, 1
      %p157 = por %p155, %p156
      %p159 = scmp.ne.s32.totalorder %s142, %s158
      %p160 = scmp.eq.s32.totalorder %s24, 0
      %p161 = por %p159, %p160
      %p162 = scmp.le.s32.totalorder 1, %s18
      %p163 = scmp.lt.s32.totalorder %s18, 3
      %p164 = pnand %p162, %p163
      %p165 = pneg %p164
      // Predicated region
      $region9: #{tpu_custom_call.1} parent=5 // pred_check
        _
      $region10: #{tpu_custom_call.1} parent=5 // pred_check_branch
        %167 = sbr.rel (%p164) target = $region12
      $region11: #{tpu_custom_call.1} parent=5 // pred_region
        %s168 = ssub.s32 %s18, 1
        // Predicated region
        $region13: #{tpu_custom_call.1} parent=11 // pred_check
          %p169 = pneg %p65
        $region14: #{tpu_custom_call.1} parent=11 // pred_check_branch
          %171 = sbr.rel (%p169) target = $region16
        $region15: #{tpu_custom_call.1} parent=11 // pred_region
          %173 = vsyncadd [#allocation6], 0
          %s174 = sshll.u32 %s1, 4
          %s175 = int_to_ptr.hbm [resolvable:$true] %s174
          %s176 = sshll.u32 [#allocation5], 4
          %s177 = int_to_ptr.vmem [resolvable:$true] %s176
          %182 = dma.hbm_to_vmem [thread:$0]  %s175, 3072, %s177, [#allocation6], 64, 64, 4
        $region16: #{tpu_custom_call.1} parent=11 // pred_fallthru
          _
        // Predicated region
        $region17: #{tpu_custom_call.1} parent=11 // pred_check
          %p183 = pneg %p86
        $region18: #{tpu_custom_call.1} parent=11 // pred_check_branch
          %185 = sbr.rel (%p183) target = $region20
        $region19: #{tpu_custom_call.1} parent=11 // pred_region
          _
        $region20: #{tpu_custom_call.1} parent=11 // pred_fallthru
          _
        // Predicated region
        $region21: #{tpu_custom_call.1} parent=11 // pred_check
          %p186 = pneg %p107
        $region22: #{tpu_custom_call.1} parent=11 // pred_check_branch
          %188 = sbr.rel (%p186) target = $region24
        $region23: #{tpu_custom_call.1} parent=11 // pred_region
          %190 = vsyncadd [#allocation6], 0
          %s191 = sshll.u32 %s3, 4
          %s192 = int_to_ptr.hbm [resolvable:$true] %s191
          %s193 = sshll.u32 [#allocation7], 4
          %s194 = int_to_ptr.vmem [resolvable:$true] %s193
          %199 = dma.hbm_to_vmem [thread:$0]  %s192, 3072, %s194, [#allocation6], 64, 64, 4
        $region24: #{tpu_custom_call.1} parent=11 // pred_fallthru
          _
        // Predicated region
        $region25: #{tpu_custom_call.1} parent=11 // pred_check
          %p200 = pneg %p128
        $region26: #{tpu_custom_call.1} parent=11 // pred_check_branch
          %202 = sbr.rel (%p200) target = $region28
        $region27: #{tpu_custom_call.1} parent=11 // pred_region
          _
        $region28: #{tpu_custom_call.1} parent=11 // pred_fallthru
          _
      $region12: #{tpu_custom_call.1} parent=5 // pred_fallthru
        _
      %p203 = scmp.lt.s32.totalorder %s18, 2
      // Predicated region
      $region29: #{tpu_custom_call.1} parent=5 // pred_check
        %p204 = pneg %p203
      $region30: #{tpu_custom_call.1} parent=5 // pred_check_branch
        %206 = sbr.rel (%p204) target = $region32
      $region31: #{tpu_custom_call.1} parent=5 // pred_region
        // Predicated region
        $region33: #{tpu_custom_call.1} parent=31 // pred_check
          %p207 = pneg %p38
        $region34: #{tpu_custom_call.1} parent=31 // pred_check_branch
          %209 = sbr.rel (%p207) target = $region36
        $region35: #{tpu_custom_call.1} parent=31 // pred_region
          %s210 = sand.u32 %s28, 1
          %s211 = scalar_lea.sflag [#allocation3], %s210
          %s212 = sand.u32 %s28, 1
          %s213 = smul.addr %s212, 16
          %s214 = scalar_lea.vmem [#allocation2], %s213
          %216 = vsyncadd %s211, 0
          %s217 = smul.addr %s18, 2
          %s218 = smul.addr %s217, 8
          %s219 = scalar_lea.hbm %s0, %s218
          %s220 = sshll.u32 %s219, 4
          %s221 = int_to_ptr.hbm [resolvable:$true] %s220
          %s222 = sshll.u32 %s214, 4
          %s223 = int_to_ptr.vmem [resolvable:$true] %s222
          %228 = dma.hbm_to_vmem [thread:$0]  %s221, 256, %s223, %s211, 128, 128, 8
        $region36: #{tpu_custom_call.1} parent=31 // pred_fallthru
          _
      $region32: #{tpu_custom_call.1} parent=5 // pred_fallthru
        _
      %p229 = scmp.le.s32.totalorder 1, %s18
      %p230 = scmp.lt.s32.totalorder %s18, 3
      %p231 = pnand %p229, %p230
      %p232 = pneg %p231
      // Predicated region
      $region37: #{tpu_custom_call.1} parent=5 // pred_check
        _
      $region38: #{tpu_custom_call.1} parent=5 // pred_check_branch
        %234 = sbr.rel (%p231) target = $region40
      $region39: #{tpu_custom_call.1} parent=5 // pred_region
        %s235 = ssub.s32 %s18, 1
        %s236 = sand.u32 %s31, 1
        %s237 = scalar_lea.sflag [#allocation3], %s236
        %s238 = sand.u32 %s31, 1
        %s239 = smul.addr %s238, 16
        %s240 = scalar_lea.vmem [#allocation2], %s239
        // Predicated region
        $region41: #{tpu_custom_call.1} parent=39 // pred_check
          %p241 = pneg %p44
        $region42: #{tpu_custom_call.1} parent=39 // pred_check_branch
          %243 = sbr.rel (%p241) target = $region44
        $region43: #{tpu_custom_call.1} parent=39 // pred_region
          %245 = dma.done %s237, 256
        $region44: #{tpu_custom_call.1} parent=39 // pred_fallthru
          _
        // Predicated region
        $region45: #{tpu_custom_call.1} parent=39 // pred_check
          %p246 = pneg %p65
        $region46: #{tpu_custom_call.1} parent=39 // pred_check_branch
          %248 = sbr.rel (%p246) target = $region48
        $region47: #{tpu_custom_call.1} parent=39 // pred_region
          %250 = dma.done [#allocation6], 3072
        $region48: #{tpu_custom_call.1} parent=39 // pred_fallthru
          _
        // Predicated region
        $region49: #{tpu_custom_call.1} parent=39 // pred_check
          %p251 = pneg %p107
        $region50: #{tpu_custom_call.1} parent=39 // pred_check_branch
          %253 = sbr.rel (%p251) target = $region52
        $region51: #{tpu_custom_call.1} parent=39 // pred_region
          %255 = dma.done [#allocation6], 3072
        $region52: #{tpu_custom_call.1} parent=39 // pred_fallthru
          _
        %s256 = sand.u32 %s31, 1
        %s257 = scalar_lea.sflag [#allocation3], %s256
        %s258 = sand.u32 %s31, 1
        %s259 = smul.addr %s258, 16
        %s260 = scalar_lea.vmem [#allocation2], %s259
        %p261 = pneg %p44
        %p262 = pneg %p41
        %p263 = pneg %p65
        %p264 = pneg %p62
        %p265 = pneg %p86
        %p266 = pneg %p83
        %p267 = pneg %p107
        %p268 = pneg %p104
        %p269 = pneg %p128
        %p270 = pneg %p125
        %p271 = pneg %p154
        %p272 = pneg %p151
        %s273 = sand.u32 %s141, 1
        %s274 = scalar_lea.sflag [#allocation4], %s273
        %s275 = sand.u32 %s141, 1
        %s276 = smul.addr %s275, 16
        %s277 = scalar_lea.vmem [#allocation8], %s276
        %v279 = vld [vmem:[%s240] sm:$0xff]
        %v280 = vld [vmem:[%s240 + $0x8] sm:$0xff]
        %v281 = vpack.c.bf16 %v279, %v279
        %v282 = vpack.c.bf16 %v280, %v280
        %v285 = vunpack.c.l.b16 %v281
        %v286 = vunpack.c.l.b16 %v282
        %v287 = vpack.c.b16 %v286, %v285
        %v289 = vshrl.u32 %v287, 16
        %v291 = vrot.slane %v289, 7
        %v292 = vshll.u32 %v287, 16
        %v294 = vor.u32 %v291, %v292
        %vm297 = vcmask 1040384
        %vm298 = vsmask.f32 256
        %vm299 = vmand %vm297, %vm298
        %v300 = vsel %vm299, 0, %v294
        %v301 = vsel %vm299, %v291, 0
        %vm302 = vsmask.f32 7424
        %v304 = vshrl.u32 %v300, 16
        %v306 = vshll.u32 %v300, 16
        %v308 = vrot.slane %v306, 1
        %v309 = vor.u32 %v304, %v308
        %v311 = vshll.u32 %v301, 16
        %v313 = vrot.slane %v311, 1
        %v314 = vsel %vm302, %v309, %v313
        %vm318 = vcmask 1046528
        %v319 = vrot.slane %v300, 1
        %v320 = vrot.slane %v301, 1
        %v321 = vsel %vm318, %v319, %v320
        %v323 = vld [vmem:[#allocation5] sm:$0xf]
        %v324 = vld [vmem:[#allocation5 + $0x4] sm:$0xf]
        %v325 = vld [vmem:[#allocation5 + $0x8] sm:$0xf]
        %v326 = vld [vmem:[#allocation5 + $0xc] sm:$0xf]
        %v327 = vld [vmem:[#allocation5 + $0x10] sm:$0xf]
        %v328 = vld [vmem:[#allocation5 + $0x14] sm:$0xf]
        %v329 = vld [vmem:[#allocation5 + $0x18] sm:$0xf]
        %v330 = vld [vmem:[#allocation5 + $0x1c] sm:$0xf]
        %v331 = vld [vmem:[#allocation5 + $0x20] sm:$0xf]
        %v332 = vld [vmem:[#allocation5 + $0x24] sm:$0xf]
        %v333 = vld [vmem:[#allocation5 + $0x28] sm:$0xf]
        %v334 = vld [vmem:[#allocation5 + $0x2c] sm:$0xf]
        %v335 = vld [vmem:[#allocation5 + $0x30] sm:$0xf]
        %v336 = vld [vmem:[#allocation5 + $0x34] sm:$0xf]
        %v337 = vld [vmem:[#allocation5 + $0x38] sm:$0xf]
        %v338 = vld [vmem:[#allocation5 + $0x3c] sm:$0xf]
        %v339 = vld [vmem:[#allocation5 + $0x40] sm:$0xf]
        %v340 = vld [vmem:[#allocation5 + $0x44] sm:$0xf]
        %v341 = vld [vmem:[#allocation5 + $0x48] sm:$0xf]
        %v342 = vld [vmem:[#allocation5 + $0x4c] sm:$0xf]
        %v343 = vld [vmem:[#allocation5 + $0x50] sm:$0xf]
        %v344 = vld [vmem:[#allocation5 + $0x54] sm:$0xf]
        %v345 = vld [vmem:[#allocation5 + $0x58] sm:$0xf]
        %v346 = vld [vmem:[#allocation5 + $0x5c] sm:$0xf]
        %v347 = vld [vmem:[#allocation5 + $0x60] sm:$0xf]
        %v348 = vld [vmem:[#allocation5 + $0x64] sm:$0xf]
        %v349 = vld [vmem:[#allocation5 + $0x68] sm:$0xf]
        %v350 = vld [vmem:[#allocation5 + $0x6c] sm:$0xf]
        %v351 = vld [vmem:[#allocation5 + $0x70] sm:$0xf]
        %v352 = vld [vmem:[#allocation5 + $0x74] sm:$0xf]
        %v353 = vld [vmem:[#allocation5 + $0x78] sm:$0xf]
        %v354 = vld [vmem:[#allocation5 + $0x7c] sm:$0xf]
        %v355 = vld [vmem:[#allocation5 + $0x80] sm:$0xf]
        %v356 = vld [vmem:[#allocation5 + $0x84] sm:$0xf]
        %v357 = vld [vmem:[#allocation5 + $0x88] sm:$0xf]
        %v358 = vld [vmem:[#allocation5 + $0x8c] sm:$0xf]
        %v359 = vld [vmem:[#allocation5 + $0x90] sm:$0xf]
        %v360 = vld [vmem:[#allocation5 + $0x94] sm:$0xf]
        %v361 = vld [vmem:[#allocation5 + $0x98] sm:$0xf]
        %v362 = vld [vmem:[#allocation5 + $0x9c] sm:$0xf]
        %v363 = vld [vmem:[#allocation5 + $0xa0] sm:$0xf]
        %v364 = vld [vmem:[#allocation5 + $0xa4] sm:$0xf]
        %v365 = vld [vmem:[#allocation5 + $0xa8] sm:$0xf]
        %v366 = vld [vmem:[#allocation5 + $0xac] sm:$0xf]
        %v367 = vld [vmem:[#allocation5 + $0xb0] sm:$0xf]
        %v368 = vld [vmem:[#allocation5 + $0xb4] sm:$0xf]
        %v369 = vld [vmem:[#allocation5 + $0xb8] sm:$0xf]
        %v370 = vld [vmem:[#allocation5 + $0xbc] sm:$0xf]
        %v371 = vld [vmem:[%s2] sm:$0x1]
        %v373 = vperm.slane %v371, 0
        %v423 = vunpack.c.l.b16 %v323
        %v424 = vunpack.c.l.b16 %v324
        %v425 = vunpack.c.l.b16 %v325
        %v426 = vunpack.c.l.b16 %v326
        %v427 = vunpack.c.l.b16 %v327
        %v428 = vunpack.c.l.b16 %v328
        %v429 = vunpack.c.l.b16 %v329
        %v430 = vunpack.c.l.b16 %v330
        %v431 = vunpack.c.l.b16 %v331
        %v432 = vunpack.c.l.b16 %v332
        %v433 = vunpack.c.l.b16 %v333
        %v434 = vunpack.c.l.b16 %v334
        %v435 = vunpack.c.l.b16 %v335
        %v436 = vunpack.c.l.b16 %v336
        %v437 = vunpack.c.l.b16 %v337
        %v438 = vunpack.c.l.b16 %v338
        %v439 = vunpack.c.l.b16 %v339
        %v440 = vunpack.c.l.b16 %v340
        %v441 = vunpack.c.l.b16 %v341
        %v442 = vunpack.c.l.b16 %v342
        %v443 = vunpack.c.l.b16 %v343
        %v444 = vunpack.c.l.b16 %v344
        %v445 = vunpack.c.l.b16 %v345
        %v446 = vunpack.c.l.b16 %v346
        %v447 = vunpack.c.l.b16 %v347
        %v448 = vunpack.c.l.b16 %v348
        %v449 = vunpack.c.l.b16 %v349
        %v450 = vunpack.c.l.b16 %v350
        %v451 = vunpack.c.l.b16 %v351
        %v452 = vunpack.c.l.b16 %v352
        %v453 = vunpack.c.l.b16 %v353
        %v454 = vunpack.c.l.b16 %v354
        %v455 = vunpack.c.l.b16 %v355
        %v456 = vunpack.c.l.b16 %v356
        %v457 = vunpack.c.l.b16 %v357
        %v458 = vunpack.c.l.b16 %v358
        %v459 = vunpack.c.l.b16 %v359
        %v460 = vunpack.c.l.b16 %v360
        %v461 = vunpack.c.l.b16 %v361
        %v462 = vunpack.c.l.b16 %v362
        %v463 = vunpack.c.l.b16 %v363
        %v464 = vunpack.c.l.b16 %v364
        %v465 = vunpack.c.l.b16 %v365
        %v466 = vunpack.c.l.b16 %v366
        %v467 = vunpack.c.l.b16 %v367
        %v468 = vunpack.c.l.b16 %v368
        %v469 = vunpack.c.l.b16 %v369
        %v470 = vunpack.c.l.b16 %v370
        %v471 = vpack.c.b16 %v424, %v423
        %v472 = vpack.c.b16 %v426, %v425
        %v473 = vpack.c.b16 %v428, %v427
        %v474 = vpack.c.b16 %v430, %v429
        %v475 = vpack.c.b16 %v432, %v431
        %v476 = vpack.c.b16 %v434, %v433
        %v477 = vpack.c.b16 %v436, %v435
        %v478 = vpack.c.b16 %v438, %v437
        %v479 = vpack.c.b16 %v440, %v439
        %v480 = vpack.c.b16 %v442, %v441
        %v481 = vpack.c.b16 %v444, %v443
        %v482 = vpack.c.b16 %v446, %v445
        %v483 = vpack.c.b16 %v448, %v447
        %v484 = vpack.c.b16 %v450, %v449
        %v485 = vpack.c.b16 %v452, %v451
        %v486 = vpack.c.b16 %v454, %v453
        %v487 = vpack.c.b16 %v456, %v455
        %v488 = vpack.c.b16 %v458, %v457
        %v489 = vpack.c.b16 %v460, %v459
        %v490 = vpack.c.b16 %v462, %v461
        %v491 = vpack.c.b16 %v464, %v463
        %v492 = vpack.c.b16 %v466, %v465
        %v493 = vpack.c.b16 %v468, %v467
        %v494 = vpack.c.b16 %v470, %v469
        %519 = vmatpush.bf16.msra.mxu0 %v478
        %520 = vmatpush.bf16.msra.mxu0 %v477
        %521 = vmatpush.bf16.msra.mxu0 %v476
        %522 = vmatpush.bf16.msra.mxu0 %v475
        %523 = vmatpush.bf16.msra.mxu0 %v474
        %524 = vmatpush.bf16.msra.mxu0 %v473
        %525 = vmatpush.bf16.msra.mxu0 %v472
        %526 = vmatpush.bf16.msra.mxu0 %v471
        %527 = vmatmul.bf16.gmra.mxu0 %v300
        %v528 = vpop.f32.mrf.mxu0
        %v529 = vadd.f32 %v373, %v528
        %v530 = vpop.f32.mrf.mxu0
        %v531 = vadd.f32 %v373, %v530
        %532 = vdwg.mxu0
        %533 = vmatpush.bf16.msra.mxu0 %v486
        %534 = vmatpush.bf16.msra.mxu0 %v485
        %535 = vmatpush.bf16.msra.mxu0 %v484
        %536 = vmatpush.bf16.msra.mxu0 %v483
        %537 = vmatpush.bf16.msra.mxu0 %v482
        %538 = vmatpush.bf16.msra.mxu0 %v481
        %539 = vmatpush.bf16.msra.mxu0 %v480
        %540 = vmatpush.bf16.msra.mxu0 %v479
        %541 = vmatmul.bf16.gmra.mxu0 %v314
        %v542 = vpop.f32.mrf.mxu0
        %v543 = vadd.f32 %v529, %v542
        %v544 = vpop.f32.mrf.mxu0
        %v545 = vadd.f32 %v531, %v544
        %546 = vdwg.mxu0
        %547 = vmatpush.bf16.msra.mxu0 %v494
        %548 = vmatpush.bf16.msra.mxu0 %v493
        %549 = vmatpush.bf16.msra.mxu0 %v492
        %550 = vmatpush.bf16.msra.mxu0 %v491
        %551 = vmatpush.bf16.msra.mxu0 %v490
        %552 = vmatpush.bf16.msra.mxu0 %v489
        %553 = vmatpush.bf16.msra.mxu0 %v488
        %554 = vmatpush.bf16.msra.mxu0 %v487
        %555 = vmatmul.bf16.gmra.mxu0 %v321
        %v556 = vpop.f32.mrf.mxu0
        %v557 = vadd.f32 %v543, %v556
        %v558 = vpop.f32.mrf.mxu0
        %v559 = vadd.f32 %v545, %v558
        %560 = vdwg.mxu0
        %v561 = vmax.f32 %v557, 0.0
        %v562 = vmax.f32 %v559, 0.0
        %v563 = vpack.c.bf16 %v561, %v561
        %v564 = vpack.c.bf16 %v562, %v562
        %v567 = vunpack.c.l.b16 %v563
        %v568 = vunpack.c.l.b16 %v564
        %v569 = vpack.c.b16 %v568, %v567
        %v571 = vshrl.u32 %v569, 16
        %v573 = vrot.slane %v571, 7
        %v574 = vshll.u32 %v569, 16
        %v576 = vor.u32 %v573, %v574
        %v579 = vsel %vm299, 0, %v576
        %v580 = vsel %vm299, %v573, 0
        %v582 = vshrl.u32 %v579, 16
        %v584 = vshll.u32 %v579, 16
        %v586 = vrot.slane %v584, 1
        %v587 = vor.u32 %v582, %v586
        %v589 = vshll.u32 %v580, 16
        %v591 = vrot.slane %v589, 1
        %v592 = vsel %vm302, %v587, %v591
        %v596 = vrot.slane %v579, 1
        %v597 = vrot.slane %v580, 1
        %v598 = vsel %vm318, %v596, %v597
        %v600 = vld [vmem:[#allocation7] sm:$0xf]
        %v601 = vld [vmem:[#allocation7 + $0x4] sm:$0xf]
        %v602 = vld [vmem:[#allocation7 + $0x8] sm:$0xf]
        %v603 = vld [vmem:[#allocation7 + $0xc] sm:$0xf]
        %v604 = vld [vmem:[#allocation7 + $0x10] sm:$0xf]
        %v605 = vld [vmem:[#allocation7 + $0x14] sm:$0xf]
        %v606 = vld [vmem:[#allocation7 + $0x18] sm:$0xf]
        %v607 = vld [vmem:[#allocation7 + $0x1c] sm:$0xf]
        %v608 = vld [vmem:[#allocation7 + $0x20] sm:$0xf]
        %v609 = vld [vmem:[#allocation7 + $0x24] sm:$0xf]
        %v610 = vld [vmem:[#allocation7 + $0x28] sm:$0xf]
        %v611 = vld [vmem:[#allocation7 + $0x2c] sm:$0xf]
        %v612 = vld [vmem:[#allocation7 + $0x30] sm:$0xf]
        %v613 = vld [vmem:[#allocation7 + $0x34] sm:$0xf]
        %v614 = vld [vmem:[#allocation7 + $0x38] sm:$0xf]
        %v615 = vld [vmem:[#allocation7 + $0x3c] sm:$0xf]
        %v616 = vld [vmem:[#allocation7 + $0x40] sm:$0xf]
        %v617 = vld [vmem:[#allocation7 + $0x44] sm:$0xf]
        %v618 = vld [vmem:[#allocation7 + $0x48] sm:$0xf]
        %v619 = vld [vmem:[#allocation7 + $0x4c] sm:$0xf]
        %v620 = vld [vmem:[#allocation7 + $0x50] sm:$0xf]
        %v621 = vld [vmem:[#allocation7 + $0x54] sm:$0xf]
        %v622 = vld [vmem:[#allocation7 + $0x58] sm:$0xf]
        %v623 = vld [vmem:[#allocation7 + $0x5c] sm:$0xf]
        %v624 = vld [vmem:[#allocation7 + $0x60] sm:$0xf]
        %v625 = vld [vmem:[#allocation7 + $0x64] sm:$0xf]
        %v626 = vld [vmem:[#allocation7 + $0x68] sm:$0xf]
        %v627 = vld [vmem:[#allocation7 + $0x6c] sm:$0xf]
        %v628 = vld [vmem:[#allocation7 + $0x70] sm:$0xf]
        %v629 = vld [vmem:[#allocation7 + $0x74] sm:$0xf]
        %v630 = vld [vmem:[#allocation7 + $0x78] sm:$0xf]
        %v631 = vld [vmem:[#allocation7 + $0x7c] sm:$0xf]
        %v632 = vld [vmem:[#allocation7 + $0x80] sm:$0xf]
        %v633 = vld [vmem:[#allocation7 + $0x84] sm:$0xf]
        %v634 = vld [vmem:[#allocation7 + $0x88] sm:$0xf]
        %v635 = vld [vmem:[#allocation7 + $0x8c] sm:$0xf]
        %v636 = vld [vmem:[#allocation7 + $0x90] sm:$0xf]
        %v637 = vld [vmem:[#allocation7 + $0x94] sm:$0xf]
        %v638 = vld [vmem:[#allocation7 + $0x98] sm:$0xf]
        %v639 = vld [vmem:[#allocation7 + $0x9c] sm:$0xf]
        %v640 = vld [vmem:[#allocation7 + $0xa0] sm:$0xf]
        %v641 = vld [vmem:[#allocation7 + $0xa4] sm:$0xf]
        %v642 = vld [vmem:[#allocation7 + $0xa8] sm:$0xf]
        %v643 = vld [vmem:[#allocation7 + $0xac] sm:$0xf]
        %v644 = vld [vmem:[#allocation7 + $0xb0] sm:$0xf]
        %v645 = vld [vmem:[#allocation7 + $0xb4] sm:$0xf]
        %v646 = vld [vmem:[#allocation7 + $0xb8] sm:$0xf]
        %v647 = vld [vmem:[#allocation7 + $0xbc] sm:$0xf]
        %v648 = vld [vmem:[%s4] sm:$0x1]
        %v650 = vperm.slane %v648, 0
        %v700 = vunpack.c.l.b16 %v600
        %v701 = vunpack.c.l.b16 %v601
        %v702 = vunpack.c.l.b16 %v602
        %v703 = vunpack.c.l.b16 %v603
        %v704 = vunpack.c.l.b16 %v604
        %v705 = vunpack.c.l.b16 %v605
        %v706 = vunpack.c.l.b16 %v606
        %v707 = vunpack.c.l.b16 %v607
        %v708 = vunpack.c.l.b16 %v608
        %v709 = vunpack.c.l.b16 %v609
        %v710 = vunpack.c.l.b16 %v610
        %v711 = vunpack.c.l.b16 %v611
        %v712 = vunpack.c.l.b16 %v612
        %v713 = vunpack.c.l.b16 %v613
        %v714 = vunpack.c.l.b16 %v614
        %v715 = vunpack.c.l.b16 %v615
        %v716 = vunpack.c.l.b16 %v616
        %v717 = vunpack.c.l.b16 %v617
        %v718 = vunpack.c.l.b16 %v618
        %v719 = vunpack.c.l.b16 %v619
        %v720 = vunpack.c.l.b16 %v620
        %v721 = vunpack.c.l.b16 %v621
        %v722 = vunpack.c.l.b16 %v622
        %v723 = vunpack.c.l.b16 %v623
        %v724 = vunpack.c.l.b16 %v624
        %v725 = vunpack.c.l.b16 %v625
        %v726 = vunpack.c.l.b16 %v626
        %v727 = vunpack.c.l.b16 %v627
        %v728 = vunpack.c.l.b16 %v628
        %v729 = vunpack.c.l.b16 %v629
        %v730 = vunpack.c.l.b16 %v630
        %v731 = vunpack.c.l.b16 %v631
        %v732 = vunpack.c.l.b16 %v632
        %v733 = vunpack.c.l.b16 %v633
        %v734 = vunpack.c.l.b16 %v634
        %v735 = vunpack.c.l.b16 %v635
        %v736 = vunpack.c.l.b16 %v636
        %v737 = vunpack.c.l.b16 %v637
        %v738 = vunpack.c.l.b16 %v638
        %v739 = vunpack.c.l.b16 %v639
        %v740 = vunpack.c.l.b16 %v640
        %v741 = vunpack.c.l.b16 %v641
        %v742 = vunpack.c.l.b16 %v642
        %v743 = vunpack.c.l.b16 %v643
        %v744 = vunpack.c.l.b16 %v644
        %v745 = vunpack.c.l.b16 %v645
        %v746 = vunpack.c.l.b16 %v646
        %v747 = vunpack.c.l.b16 %v647
        %v748 = vpack.c.b16 %v701, %v700
        %v749 = vpack.c.b16 %v703, %v702
        %v750 = vpack.c.b16 %v705, %v704
        %v751 = vpack.c.b16 %v707, %v706
        %v752 = vpack.c.b16 %v709, %v708
        %v753 = vpack.c.b16 %v711, %v710
        %v754 = vpack.c.b16 %v713, %v712
        %v755 = vpack.c.b16 %v715, %v714
        %v756 = vpack.c.b16 %v717, %v716
        %v757 = vpack.c.b16 %v719, %v718
        %v758 = vpack.c.b16 %v721, %v720
        %v759 = vpack.c.b16 %v723, %v722
        %v760 = vpack.c.b16 %v725, %v724
        %v761 = vpack.c.b16 %v727, %v726
        %v762 = vpack.c.b16 %v729, %v728
        %v763 = vpack.c.b16 %v731, %v730
        %v764 = vpack.c.b16 %v733, %v732
        %v765 = vpack.c.b16 %v735, %v734
        %v766 = vpack.c.b16 %v737, %v736
        %v767 = vpack.c.b16 %v739, %v738
        %v768 = vpack.c.b16 %v741, %v740
        %v769 = vpack.c.b16 %v743, %v742
        %v770 = vpack.c.b16 %v745, %v744
        %v771 = vpack.c.b16 %v747, %v746
        %796 = vmatpush.bf16.msra.mxu0 %v755
        %797 = vmatpush.bf16.msra.mxu0 %v754
        %798 = vmatpush.bf16.msra.mxu0 %v753
        %799 = vmatpush.bf16.msra.mxu0 %v752
        %800 = vmatpush.bf16.msra.mxu0 %v751
        %801 = vmatpush.bf16.msra.mxu0 %v750
        %802 = vmatpush.bf16.msra.mxu0 %v749
        %803 = vmatpush.bf16.msra.mxu0 %v748
        %804 = vmatmul.bf16.gmra.mxu0 %v579
        %v805 = vpop.f32.mrf.mxu0
        %v806 = vadd.f32 %v650, %v805
        %v807 = vpop.f32.mrf.mxu0
        %v808 = vadd.f32 %v650, %v807
        %809 = vdwg.mxu0
        %810 = vmatpush.bf16.msra.mxu0 %v763
        %811 = vmatpush.bf16.msra.mxu0 %v762
        %812 = vmatpush.bf16.msra.mxu0 %v761
        %813 = vmatpush.bf16.msra.mxu0 %v760
        %814 = vmatpush.bf16.msra.mxu0 %v759
        %815 = vmatpush.bf16.msra.mxu0 %v758
        %816 = vmatpush.bf16.msra.mxu0 %v757
        %817 = vmatpush.bf16.msra.mxu0 %v756
        %818 = vmatmul.bf16.gmra.mxu0 %v592
        %v819 = vpop.f32.mrf.mxu0
        %v820 = vadd.f32 %v806, %v819
        %v821 = vpop.f32.mrf.mxu0
        %v822 = vadd.f32 %v808, %v821
        %823 = vdwg.mxu0
        %824 = vmatpush.bf16.msra.mxu0 %v771
        %825 = vmatpush.bf16.msra.mxu0 %v770
        %826 = vmatpush.bf16.msra.mxu0 %v769
        %827 = vmatpush.bf16.msra.mxu0 %v768
        %828 = vmatpush.bf16.msra.mxu0 %v767
        %829 = vmatpush.bf16.msra.mxu0 %v766
        %830 = vmatpush.bf16.msra.mxu0 %v765
        %831 = vmatpush.bf16.msra.mxu0 %v764
        %832 = vmatmul.bf16.gmra.mxu0 %v598
        %v833 = vpop.f32.mrf.mxu0
        %v834 = vadd.f32 %v820, %v833
        %v835 = vpop.f32.mrf.mxu0
        %v836 = vadd.f32 %v822, %v835
        %837 = vdwg.mxu0
        %v838 = vadd.f32 %v834, %v279
        %v839 = vadd.f32 %v836, %v280
        %v840 = vmax.f32 %v838, 0.0
        %v841 = vmax.f32 %v839, 0.0
        %842 = vst [vmem:[%s277] sm:$0xff] %v840
        %843 = vst [vmem:[%s277 + $0x8] sm:$0xff] %v841
        %s844 = sand.u32 %s141, 1
        %s845 = scalar_lea.sflag [#allocation4], %s844
        %s846 = sand.u32 %s141, 1
        %s847 = smul.addr %s846, 16
        %s848 = scalar_lea.vmem [#allocation8], %s847
        // Predicated region
        $region53: #{tpu_custom_call.1} parent=39 // pred_check
          %p849 = pneg %p151
        $region54: #{tpu_custom_call.1} parent=39 // pred_check_branch
          %851 = sbr.rel (%p849) target = $region56
        $region55: #{tpu_custom_call.1} parent=39 // pred_region
          %853 = vsyncadd %s845, 0
          %s854 = smul.addr %s23, 2
          %s855 = smul.addr %s854, 8
          %s856 = scalar_lea.hbm %s5, %s855
          %s857 = sshll.u32 %s848, 4
          %s858 = int_to_ptr.vmem [resolvable:$true] %s857
          %s859 = sshll.u32 %s856, 4
          %s860 = int_to_ptr.hbm [resolvable:$true] %s859
          %865 = dma.vmem_to_hbm [thread:$0]  %s858, 256, %s860, %s845, 128, 128, 8
        $region56: #{tpu_custom_call.1} parent=39 // pred_fallthru
          _
      $region40: #{tpu_custom_call.1} parent=5 // pred_fallthru
        _
      %p866 = scmp.le.s32.totalorder 2, %s18
      // Predicated region
      $region57: #{tpu_custom_call.1} parent=5 // pred_check
        %p867 = pneg %p866
      $region58: #{tpu_custom_call.1} parent=5 // pred_check_branch
        %869 = sbr.rel (%p867) target = $region60
      $region59: #{tpu_custom_call.1} parent=5 // pred_region
        %s870 = ssub.s32 %s18, 2
        // Predicated region
        $region61: #{tpu_custom_call.1} parent=59 // pred_check
          %p871 = pneg %p157
        $region62: #{tpu_custom_call.1} parent=59 // pred_check_branch
          %873 = sbr.rel (%p871) target = $region64
        $region63: #{tpu_custom_call.1} parent=59 // pred_region
          %s874 = sand.u32 %s142, 1
          %s875 = scalar_lea.sflag [#allocation4], %s874
          %s876 = sand.u32 %s142, 1
          %s877 = smul.addr %s876, 16
          %s878 = scalar_lea.vmem [#allocation8], %s877
          %880 = dma.done %s875, 256
        $region64: #{tpu_custom_call.1} parent=59 // pred_fallthru
          _
      $region60: #{tpu_custom_call.1} parent=5 // pred_fallthru
        _
    $region6: #{tpu_custom_call.1} parent=1 // loop_footer
      %s22 = sadd.s32 1, %s18
    $region7: #{tpu_custom_call.1} parent=1 // loop_footer_branch
      %17 = sbr.rel target = $region3
    $region8: #{tpu_custom_call.1} parent=1 // loop_exit
      _
    %881 = vsyncpa [#allocation3], 1
    %s882 = scalar_lea.sflag [#allocation3], 1
    %883 = vsyncpa %s882, 1
    %884 = vsyncpa [#allocation6], 1
    %885 = vsyncpa [#allocation4], 1
    %s886 = scalar_lea.sflag [#allocation4], 1
    %887 = vsyncpa %s886, 1

</llo_original>
